<compile_context>
chip_gen: v6e
topology: v6e:2x2x1
jax: 0.10.0
libtpu: 0.0.40
codegen_flags: <defaults>
</compile_context>

<pallas_src>
import functools

import jax
import jax.numpy as jnp
from jax.experimental import pallas as pl
from jax.experimental.pallas import tpu as pltpu


NEG_BIG = -1e30  # finite "-inf": avoids inf-inf -> NaN when a row has no neighbors


def project_kernel(h_ref, w_ref, asrc_ref, anbr_ref, hi_ref, ssrc_ref, snbr_ref):
    """Head-fused projection + per-node attention scores (computed once).

    h_ref:    (TQ, F_IN) node features for this row tile
    w_ref:    (F_IN, HF) head-fused projection weight
    asrc_ref: (HF, H)    block-diag columns of a_src (folded attention vector)
    anbr_ref: (HF, H)    block-diag columns of a_nbr
    hi_ref:   (TQ, HF)   bf16 projected features (value operand for stage 2)
    ssrc_ref: (TQ, H)    f32 source score per node & head
    snbr_ref: (TQ, H)    f32 neighbor score per node & head
    """
    hi = jnp.dot(h_ref[...], w_ref[...], preferred_element_type=jnp.float32)
    ssrc_ref[...] = jnp.dot(hi, asrc_ref[...], preferred_element_type=jnp.float32)
    snbr_ref[...] = jnp.dot(hi, anbr_ref[...], preferred_element_type=jnp.float32)
    hi_ref[...] = hi.astype(hi_ref.dtype)


def gat_attention_kernel(hi_ref, ssrc_ref, snbr_ref, adj_ref, o_ref,
                         m_sc, l_sc, acc_sc, *, num_heads, f_out):
    """One grid step == (row tile q) x (neighbor block k); flash-style online softmax.

    hi_ref:   (TN, HF) bf16   projected features of this neighbor block (values)
    ssrc_ref: (TQ, H)  f32    source scores for this row tile (all heads)
    snbr_ref: (H, TN)  f32    neighbor scores for this block (all heads, lane-dense)
    adj_ref:  (TQ, TN) int8   adjacency tile (0 => no edge)
    o_ref:    (TQ, HF) f32    output rows, torch (N, H*F) layout; written on last k
    m_sc:     (TQ, H)  f32    running max per head
    l_sc:     (TQ, H)  f32    running softmax denominator per head
    acc_sc:   (TQ, HF) f32    running weighted value sum per head
    """
    k = pl.program_id(1)

    @pl.when(k == 0)
    def _():
        m_sc[...] = jnp.full_like(m_sc, NEG_BIG)
        l_sc[...] = jnp.zeros_like(l_sc)
        acc_sc[...] = jnp.zeros_like(acc_sc)

    adj_is_zero = adj_ref[...] == 0          # (TQ, TN) bool
    hi_blk = hi_ref[...]                     # (TN, HF) bf16
    s_src = ssrc_ref[...]                    # (TQ, H)  f32
    s_nbr = snbr_ref[...]                    # (H, TN)  f32

    for i in range(num_heads):
        cols = slice(i * f_out, (i + 1) * f_out)
        raw = s_src[:, i:i + 1] + s_nbr[i:i + 1, :]            # (TQ, TN)
        scores = jnp.maximum(raw, 0.2 * raw)                   # LeakyReLU(0.2)
        scores = jnp.where(adj_is_zero, NEG_BIG, scores)       # masked_fill

        m_prev = m_sc[:, i:i + 1]                              # (TQ, 1)
        m_new = jnp.maximum(m_prev, jnp.max(scores, axis=-1, keepdims=True))
        alpha = jnp.exp(m_prev - m_new)                        # (TQ, 1)
        # exp kept in f32 so the same kernel stays accurate on v5e; on v6e/v7x a
        # bf16 exp would roughly double EUP throughput here.
        p = jnp.exp(scores - m_new)                            # (TQ, TN) f32
        l_sc[:, i:i + 1] = alpha * l_sc[:, i:i + 1] + jnp.sum(p, axis=-1, keepdims=True)
        acc_sc[:, cols] = alpha * acc_sc[:, cols] + jnp.dot(
            p.astype(jnp.bfloat16), hi_blk[:, cols],
            preferred_element_type=jnp.float32)                # (TQ, F)
        m_sc[:, i:i + 1] = m_new

    # TODO(synk): F.dropout on attention weights skipped (dropout=0.0 / eval mode).

    @pl.when(k == pl.num_programs(1) - 1)
    def _():
        # Deferred softmax normalization: one (TQ, F)-sized scale per head instead of
        # a full-width (TQ, N) multiply, then a single lane-dense store.
        for i in range(num_heads):
            cols = slice(i * f_out, (i + 1) * f_out)
            inv = pl.reciprocal(l_sc[:, i:i + 1], approx=True)
            acc_sc[:, cols] = acc_sc[:, cols] * inv
        o_ref[...] = acc_sc[...].astype(o_ref.dtype)


def _pick_row_tile(n, cap=256):
    """Largest divisor of n <= cap that is a multiple of 8; prefers >= 2 tiles."""
    if n <= 8:
        return n
    t = None
    for c in range(min(cap, n), 7, -1):
        if n % c == 0 and c % 8 == 0:
            t = c
            break
    if t is None:
        return n
    if n // t == 1 and t % 16 == 0:
        t //= 2  # give both v7x TensorCores a row tile
    return t


def _pick_nbr_tile(n, cap=2048):
    """Largest divisor of n <= cap that is a multiple of 128, else n (full width)."""
    if n <= cap:
        return n
    for c in range(cap, 127, -1):
        if n % c == 0 and c % 128 == 0:
            return c
    return n


def _vmem_limit_bytes(tq, tn, hf, nheads):
    """Rough per-step VMEM estimate (double-buffered operands + f32 temporaries)."""
    live = (2 * tq * tn                      # int8 adj tile (double buffered)
            + 2 * tn * hf * 2                # bf16 hi neighbor block
            + 2 * (tq + 2 * tn) * nheads * 4 # ssrc / snbr tiles
            + 2 * tq * hf * 4                # output block
            + tq * hf * 4 + 2 * tq * nheads * 4   # acc / m / l scratch
            + 6 * tq * tn * 4)               # f32 score/exp temporaries headroom
    return int(min(64 * 1024 * 1024, max(32 * 1024 * 1024, 2 * live)))


def graph_attention_forward(h, w_heads, a_mat, adj, row_tile=None, nbr_tile=None):
    """Pallas wrapper. Returns (N, H * out_features), matching the torch module."""
    N, f_in = h.shape
    H, _, f_out = w_heads.shape
    hf = H * f_out

    # Head-fused projection weight: (F_IN, H*F), column block i == W[head i].
    w_all = jnp.transpose(w_heads, (1, 0, 2)).reshape(f_in, hf)

    # Fold the shared attention vector into block-diagonal matrices so scores for
    # all heads come from a single small matmul each (done once, in stage 1).
    a_src, a_nbr = a_mat[0], a_mat[1]                        # (F,), (F,)
    eye_h = jnp.eye(H, dtype=jnp.float32)
    asrc_cols = jnp.kron(eye_h, a_src[:, None])              # (HF, H)
    anbr_cols = jnp.kron(eye_h, a_nbr[:, None])              # (HF, H)

    # Adjacency as int8: 4x less HBM traffic on the dominant N^2 stream.
    # TODO(synk): on v5e, 1-bit packed adjacency (uint32 lanes) would cut it 8x more.
    adj_i8 = (adj != 0).astype(jnp.int8)

    tq = row_tile if row_tile is not None else _pick_row_tile(N)
    tn = nbr_tile if nbr_tile is not None else _pick_nbr_tile(N)
    assert N % tq == 0 and N % tn == 0, (N, tq, tn)
    nq, nk = N // tq, N // tn

    # Stage 1: head-fused projection + per-node scores, computed once per node.
    hi, s_src, s_nbr = pl.pallas_call(
        project_kernel,
        out_shape=(jax.ShapeDtypeStruct((N, hf), jnp.bfloat16),
                   jax.ShapeDtypeStruct((N, H), jnp.float32),
                   jax.ShapeDtypeStruct((N, H), jnp.float32)),
        grid=(nq,),
        in_specs=[pl.BlockSpec((tq, f_in), lambda m: (m, 0)),
                  pl.BlockSpec((f_in, hf), lambda m: (0, 0)),
                  pl.BlockSpec((hf, H), lambda m: (0, 0)),
                  pl.BlockSpec((hf, H), lambda m: (0, 0))],
        out_specs=(pl.BlockSpec((tq, hf), lambda m: (m, 0)),
                   pl.BlockSpec((tq, H), lambda m: (m, 0)),
                   pl.BlockSpec((tq, H), lambda m: (m, 0))),
        compiler_params=pltpu.CompilerParams(dimension_semantics=("parallel",)),
    )(h, w_all, asrc_cols, anbr_cols)

    # Neighbor scores in (H, N) layout so stage 2 reads lane-dense rows directly
    # (tiny (N, H) -> (H, N) transpose done once in XLA).
    s_nbr_t = jnp.transpose(s_nbr)

    # Stage 2: (row tile) x (neighbor block) grid, online softmax, streamed operands.
    kern = functools.partial(gat_attention_kernel, num_heads=H, f_out=f_out)
    out = pl.pallas_call(
        kern,
        out_shape=jax.ShapeDtypeStruct((N, hf), jnp.float32),
        grid=(nq, nk),
        in_specs=[pl.BlockSpec((tn, hf), lambda q, k: (k, 0)),   # hi values (bf16)
                  pl.BlockSpec((tq, H), lambda q, k: (q, 0)),    # s_src rows
                  pl.BlockSpec((H, tn), lambda q, k: (0, k)),    # s_nbr cols
                  pl.BlockSpec((tq, tn), lambda q, k: (q, k))],  # adj tile (int8)
        out_specs=pl.BlockSpec((tq, hf), lambda q, k: (q, 0)),   # torch layout, lane-dense
        scratch_shapes=[pltpu.VMEM((tq, H), jnp.float32),        # running max m
                        pltpu.VMEM((tq, H), jnp.float32),        # running denom l
                        pltpu.VMEM((tq, hf), jnp.float32)],      # running weighted sum
        compiler_params=pltpu.CompilerParams(
            dimension_semantics=("parallel", "arbitrary"),
            vmem_limit_bytes=_vmem_limit_bytes(tq, tn, hf, H)),
    )(hi, s_src, s_nbr_t, adj_i8)
    return out


def graph_attention_reference(h, w_heads, a_mat, adj):
    """Plain-JAX f32 reference reproducing the torch forward semantics."""
    N = h.shape[0]
    H, _, f_out = w_heads.shape
    hT = jnp.einsum('nf,hfk->hnk', h, w_heads)                # (H, N, F)
    s1 = jnp.einsum('hnk,k->hn', hT, a_mat[0])                # (H, N)
    s2 = jnp.einsum('hnk,k->hn', hT, a_mat[1])                # (H, N)
    raw = s1[:, :, None] + s2[:, None, :]                     # (H, N, N)
    scores = jnp.where(raw >= 0.0, raw, 0.2 * raw)
    scores = jnp.where(adj[None, :, :] == 0.0, -jnp.inf, scores)
    att = jax.nn.softmax(scores, axis=-1)
    out = jnp.einsum('hpq,hqk->hpk', att, hT)                 # (H, N, F)
    return jnp.transpose(out, (1, 0, 2)).reshape(N, H * f_out)


def _make_inputs(key, n, f_in, f_out, heads):
    k_h, k_w, k_a, k_adj = jax.random.split(key, 4)
    h = jax.random.normal(k_h, (n, f_in), dtype=jnp.float32)
    w_heads = 0.1 * jax.random.normal(k_w, (heads, f_in, f_out), dtype=jnp.float32)
    a_mat = 0.1 * jax.random.normal(k_a, (2, f_out), dtype=jnp.float32)
    adj = (jax.random.uniform(k_adj, (n, n)) > 0.5).astype(jnp.float32)
    adj = jnp.maximum(adj, jnp.eye(n, dtype=jnp.float32))     # self-loops
    return h, w_heads, a_mat, adj


if __name__ == "__main__":
    key = jax.random.PRNGKey(0)
    k1, k2 = jax.random.split(key)

    # Case 1: small shapes consistent with the module (single (q, k) tile).
    N, F_IN, F_OUT, HEADS = 8, 16, 8, 4
    h, w_heads, a_mat, adj = _make_inputs(k1, N, F_IN, F_OUT, HEADS)
    out = jax.block_until_ready(graph_attention_forward(h, w_heads, a_mat, adj))
    ref = graph_attention_reference(h, w_heads, a_mat, adj)
    assert out.shape == (N, HEADS * F_OUT), out.shape
    assert jnp.allclose(out, ref, atol=2e-2, rtol=2e-2), "mismatch vs reference (case 1)"

    # Case 2: exercises the row-tiled grid AND the online-softmax neighbor-block path
    # (grid = (2 row tiles, 2 neighbor blocks)).
    N2 = 256
    h2, w2, a2, adj2 = _make_inputs(k2, N2, F_IN, F_OUT, HEADS)
    out2 = jax.block_until_ready(
        graph_attention_forward(h2, w2, a2, adj2, nbr_tile=128))
    ref2 = graph_attention_reference(h2, w2, a2, adj2)
    assert out2.shape == (N2, HEADS * F_OUT), out2.shape
    assert jnp.allclose(out2, ref2, atol=2e-2, rtol=2e-2), "mismatch vs reference (case 2)"

    print("KERNEL_OK")
</pallas_src>

<mosaic_0001>
module attributes {stable_mosaic.version = 11 : i64} {
  func.func @project_kernel(%arg0: i32, %arg1: memref<8x16xf32, #tpu.memory_space<vmem>>, %arg2: memref<16x32xf32, #tpu.memory_space<vmem>>, %arg3: memref<32x4xf32, #tpu.memory_space<vmem>>, %arg4: memref<32x4xf32, #tpu.memory_space<vmem>>, %arg5: memref<8x32xbf16, #tpu.memory_space<vmem>>, %arg6: memref<8x4xf32, #tpu.memory_space<vmem>>, %arg7: memref<8x4xf32, #tpu.memory_space<vmem>>) attributes {dimension_semantics = [#tpu.dimension_semantics<parallel>], iteration_bounds = array<i64: 1>, scalar_prefetch = 0 : i64, scratch_operands = 0 : i64, tpu.core_type = #tpu.core_type<tc>, window_params = [{transform_indices = @transform_0, window_bounds = array<i64: 8, 16>}, {pipeline_mode = #tpu.pipeline_mode<synchronous>, transform_indices = @transform_1, window_bounds = array<i64: 16, 32>}, {pipeline_mode = #tpu.pipeline_mode<synchronous>, transform_indices = @transform_2, window_bounds = array<i64: 32, 4>}, {pipeline_mode = #tpu.pipeline_mode<synchronous>, transform_indices = @transform_3, window_bounds = array<i64: 32, 4>}, {transform_indices = @transform_4, window_bounds = array<i64: 8, 32>}, {transform_indices = @transform_5, window_bounds = array<i64: 8, 4>}, {transform_indices = @transform_6, window_bounds = array<i64: 8, 4>}]} {
    %c0 = arith.constant 0 : index
    %c0_0 = arith.constant 0 : index
    %0 = vector.load %arg1[%c0, %c0_0] : memref<8x16xf32, #tpu.memory_space<vmem>>, vector<8x16xf32>
    %c0_1 = arith.constant 0 : index
    %c0_2 = arith.constant 0 : index
    %1 = vector.load %arg2[%c0_1, %c0_2] : memref<16x32xf32, #tpu.memory_space<vmem>>, vector<16x32xf32>
    %cst = arith.constant dense<0.000000e+00> : vector<8x32xf32>
    %2 = tpu.matmul %0, %1, %cst {dimension_numbers = #tpu.dot_dimension_numbers<[1], [0], [0], [1], [0, 0, 1, 1], [], []>} : vector<8x16xf32>, vector<16x32xf32>, vector<8x32xf32> -> vector<8x32xf32>
    %c0_3 = arith.constant 0 : index
    %c0_4 = arith.constant 0 : index
    %3 = vector.load %arg3[%c0_3, %c0_4] : memref<32x4xf32, #tpu.memory_space<vmem>>, vector<32x4xf32>
    %cst_5 = arith.constant dense<0.000000e+00> : vector<8x4xf32>
    %4 = tpu.matmul %2, %3, %cst_5 {dimension_numbers = #tpu.dot_dimension_numbers<[1], [0], [0], [1], [0, 0, 1, 1], [], []>} : vector<8x32xf32>, vector<32x4xf32>, vector<8x4xf32> -> vector<8x4xf32>
    %c0_6 = arith.constant 0 : index
    %c0_7 = arith.constant 0 : index
    %5 = vector.load %arg6[%c0_6, %c0_7] : memref<8x4xf32, #tpu.memory_space<vmem>>, vector<8x4xf32>
    tpu.vector_store %arg6[%c0_6, %c0_7], %4 {strides = array<i32>} : memref<8x4xf32, #tpu.memory_space<vmem>>, vector<8x4xf32>,
    %c0_8 = arith.constant 0 : index
    %c0_9 = arith.constant 0 : index
    %6 = vector.load %arg4[%c0_8, %c0_9] : memref<32x4xf32, #tpu.memory_space<vmem>>, vector<32x4xf32>
    %cst_10 = arith.constant dense<0.000000e+00> : vector<8x4xf32>
    %7 = tpu.matmul %2, %6, %cst_10 {dimension_numbers = #tpu.dot_dimension_numbers<[1], [0], [0], [1], [0, 0, 1, 1], [], []>} : vector<8x32xf32>, vector<32x4xf32>, vector<8x4xf32> -> vector<8x4xf32>
    %c0_11 = arith.constant 0 : index
    %c0_12 = arith.constant 0 : index
    %8 = vector.load %arg7[%c0_11, %c0_12] : memref<8x4xf32, #tpu.memory_space<vmem>>, vector<8x4xf32>
    tpu.vector_store %arg7[%c0_11, %c0_12], %7 {strides = array<i32>} : memref<8x4xf32, #tpu.memory_space<vmem>>, vector<8x4xf32>,
    %9 = arith.truncf %2 : vector<8x32xf32> to vector<8x32xbf16>
    %c0_13 = arith.constant 0 : index
    %c0_14 = arith.constant 0 : index
    %10 = vector.load %arg5[%c0_13, %c0_14] : memref<8x32xbf16, #tpu.memory_space<vmem>>, vector<8x32xbf16>
    tpu.vector_store %arg5[%c0_13, %c0_14], %9 {strides = array<i32>} : memref<8x32xbf16, #tpu.memory_space<vmem>>, vector<8x32xbf16>,
    return
  }
  func.func @transform_0(%arg0: i32) -> (i32, i32) {
    %c0_i32 = arith.constant 0 : i32
    %c0_i32_0 = arith.constant 0 : i32
    return %arg0, %c0_i32 : i32, i32
  }
  func.func @transform_1(%arg0: i32) -> (i32, i32) {
    %c0_i32 = arith.constant 0 : i32
    %c0_i32_0 = arith.constant 0 : i32
    %c0_i32_1 = arith.constant 0 : i32
    return %c0_i32, %c0_i32_0 : i32, i32
  }
  func.func @transform_2(%arg0: i32) -> (i32, i32) {
    %c0_i32 = arith.constant 0 : i32
    %c0_i32_0 = arith.constant 0 : i32
    %c0_i32_1 = arith.constant 0 : i32
    return %c0_i32, %c0_i32_0 : i32, i32
  }
  func.func @transform_3(%arg0: i32) -> (i32, i32) {
    %c0_i32 = arith.constant 0 : i32
    %c0_i32_0 = arith.constant 0 : i32
    %c0_i32_1 = arith.constant 0 : i32
    return %c0_i32, %c0_i32_0 : i32, i32
  }
  func.func @transform_4(%arg0: i32) -> (i32, i32) {
    %c0_i32 = arith.constant 0 : i32
    %c0_i32_0 = arith.constant 0 : i32
    return %arg0, %c0_i32 : i32, i32
  }
  func.func @transform_5(%arg0: i32) -> (i32, i32) {
    %c0_i32 = arith.constant 0 : i32
    %c0_i32_0 = arith.constant 0 : i32
    return %arg0, %c0_i32 : i32, i32
  }
  func.func @transform_6(%arg0: i32) -> (i32, i32) {
    %c0_i32 = arith.constant 0 : i32
    %c0_i32_0 = arith.constant 0 : i32
    return %arg0, %c0_i32 : i32, i32
  }
}

</mosaic_0001>

<llo_original>
// kernel: tpu_custom_call.1
$region0: #{tpu_custom_call.1}
  #allocation0 [shape = 'u32[]', space=smem, size = 0x4, offset = 0x4, fixed_abs, tag = 'smem constant byte address 0x4 - core index']
  #allocation1 [shape = 'u32[144,128]{1,0:T(1,128)}', space=vmem, size = 0x12000, scoped, tag = 'internal scratch']
  %s0 = inlined_call_operand.vmem [shape: f32[8,16], index: 0, kind: input, shape index: {}]
  %s1 = inlined_call_operand.vmem [shape: f32[16,32], index: 1, kind: input, shape index: {}]
  %s2 = inlined_call_operand.vmem [shape: f32[32,4], index: 2, kind: input, shape index: {}]
  %s3 = inlined_call_operand.vmem [shape: f32[32,4], index: 3, kind: input, shape index: {}]
  %s4 = inlined_call_operand.hbm [shape: bf16[8,32], index: 4, kind: output, shape index: {0}]
  %s5 = inlined_call_operand.vmem [shape: f32[8,4], index: 5, kind: output, shape index: {1}]
  %s6 = inlined_call_operand.vmem [shape: f32[8,4], index: 6, kind: output, shape index: {2}]
  %7 = xla_tuple %s4, %s5, %s6
  %s8 = sld [smem:[#allocation0]]
  $region42: #{tpu_custom_call.1} parent=0
    _
  %s10 = ssub.s32 1, %s8
  %s11 = scalar_select 0, %s10, %s8
  $region1: #{tpu_custom_call.1} parent=0
    #allocation2 [shape = 'u8[2048]{0}', space=vmem, size = 0x800, scoped, tag = 'output window, operand 0, single buffered']
    #allocation3 [shape = 's32[1]{0}', space=sflag, size = 0x4, scoped, tag = 'scoped memory for tpu_custom_call.1']
    %12 = vsyncpa [#allocation3], 0
    // Predicated region
    $region2: #{tpu_custom_call.1} parent=1 // pred_check
      _
    $region3: #{tpu_custom_call.1} parent=1 // pred_check_branch
      %14 = sbr.rel (0) target = $region5
    $region4: #{tpu_custom_call.1} parent=1 // pred_region
      _
    $region5: #{tpu_custom_call.1} parent=1 // pred_fallthru
      _
    // Predicated region
    $region6: #{tpu_custom_call.1} parent=1 // pred_check
      _
    $region7: #{tpu_custom_call.1} parent=1 // pred_check_branch
      %16 = sbr.rel (0) target = $region9
    $region8: #{tpu_custom_call.1} parent=1 // pred_region
      _
    $region9: #{tpu_custom_call.1} parent=1 // pred_fallthru
      _
    // Predicated region
    $region10: #{tpu_custom_call.1} parent=1 // pred_check
      _
    $region11: #{tpu_custom_call.1} parent=1 // pred_check_branch
      %18 = sbr.rel (0) target = $region13
    $region12: #{tpu_custom_call.1} parent=1 // pred_region
      _
    $region13: #{tpu_custom_call.1} parent=1 // pred_fallthru
      _
    // Predicated region
    $region14: #{tpu_custom_call.1} parent=1 // pred_check
      _
    $region15: #{tpu_custom_call.1} parent=1 // pred_check_branch
      %20 = sbr.rel (0) target = $region17
    $region16: #{tpu_custom_call.1} parent=1 // pred_region
      _
    $region17: #{tpu_custom_call.1} parent=1 // pred_fallthru
      _
    %v21 = vld [vmem:[%s0] sm:$0xff]
    %v22 = vld [vmem:[%s1] sm:$0xff]
    %v23 = vld [vmem:[%s1 + $0x8] sm:$0xff]
    %vm24 = vcmask 130048
    %v26 = vsel %vm24, %v21, 0
    %28 = vmatprep.subr.mxu0 0.0
    %29 = vmatpush1.msra.mxu0 0.0
    %30 = vmatprep.subr.mxu0 0.0
    %31 = vmatpush1.msra.mxu0 0.0
    %32 = vmatprep.subr.mxu0 0.0
    %33 = vmatpush1.msra.mxu0 0.0
    %34 = vmatprep.subr.mxu0 0.0
    %35 = vmatpush1.msra.mxu0 0.0
    %36 = vmatprep.subr.mxu0 0.0
    %37 = vmatpush1.msra.mxu0 0.0
    %38 = vmatprep.subr.mxu0 0.0
    %39 = vmatpush1.msra.mxu0 0.0
    %40 = vmatprep.subr.mxu0 0.0
    %41 = vmatpush1.msra.mxu0 0.0
    %42 = vmatprep.subr.mxu0 0.0
    %43 = vmatpush1.msra.mxu0 0.0
    %44 = vmatprep.subr.mxu0 0.0
    %45 = vmatpush1.msra.mxu0 0.0
    %46 = vmatprep.subr.mxu0 0.0
    %47 = vmatpush1.msra.mxu0 0.0
    %48 = vmatprep.subr.mxu0 0.0
    %49 = vmatpush1.msra.mxu0 0.0
    %50 = vmatprep.subr.mxu0 0.0
    %51 = vmatpush1.msra.mxu0 0.0
    %52 = vmatprep.subr.mxu0 0.0
    %53 = vmatpush1.msra.mxu0 0.0
    %54 = vmatprep.subr.mxu0 0.0
    %55 = vmatpush1.msra.mxu0 0.0
    %56 = vmatprep.subr.mxu0 0.0
    %57 = vmatpush1.msra.mxu0 %v23
    %58 = vmatprep.subr.mxu0 0.0
    %59 = vmatpush1.msra.mxu0 %v22
    %60 = vmatprep.subr.mxu0 0.0
    %61 = vmatpush2.msra.mxu0 0.0
    %62 = vmatprep.subr.mxu0 0.0
    %63 = vmatpush2.msra.mxu0 0.0
    %64 = vmatprep.subr.mxu0 0.0
    %65 = vmatpush2.msra.mxu0 0.0
    %66 = vmatprep.subr.mxu0 0.0
    %67 = vmatpush2.msra.mxu0 0.0
    %68 = vmatprep.subr.mxu0 0.0
    %69 = vmatpush2.msra.mxu0 0.0
    %70 = vmatprep.subr.mxu0 0.0
    %71 = vmatpush2.msra.mxu0 0.0
    %72 = vmatprep.subr.mxu0 0.0
    %73 = vmatpush2.msra.mxu0 0.0
    %74 = vmatprep.subr.mxu0 0.0
    %75 = vmatpush2.msra.mxu0 0.0
    %76 = vmatprep.subr.mxu0 0.0
    %77 = vmatpush2.msra.mxu0 0.0
    %78 = vmatprep.subr.mxu0 0.0
    %79 = vmatpush2.msra.mxu0 0.0
    %80 = vmatprep.subr.mxu0 0.0
    %81 = vmatpush2.msra.mxu0 0.0
    %82 = vmatprep.subr.mxu0 0.0
    %83 = vmatpush2.msra.mxu0 0.0
    %84 = vmatprep.subr.mxu0 0.0
    %85 = vmatpush2.msra.mxu0 0.0
    %86 = vmatprep.subr.mxu0 0.0
    %87 = vmatpush2.msra.mxu0 0.0
    %88 = vmatprep.subr.mxu0 0.0
    %89 = vmatpush2.msra.mxu0 0.0
    %90 = vmatprep.subr.mxu0 0.0
    %91 = vmatpush2.msra.mxu0 0.0
    %92 = vmatprep.mubr.f32.mxu0 0.0
    %93 = vmatmul.mubr.f32.gmra.mxu0 %v26
    %v94 = vpop.f32.mrf.mxu0
    %v95 = vadd.f32 0.0, %v94
    %v96 = vpop.f32.mrf.mxu0
    %97 = vdwg.mxu0
    %v98 = vld [vmem:[%s2] sm:$0xff]
    %v99 = vld [vmem:[%s2 + $0x8] sm:$0xff]
    %v100 = vld [vmem:[%s2 + $0x10] sm:$0xff]
    %v101 = vld [vmem:[%s2 + $0x18] sm:$0xff]
    %vm102 = vcmask 261120
    %v104 = vsel %vm102, %v95, 0
    %106 = vmatprep.subr.mxu0 0.0
    %107 = vmatpush1.msra.mxu0 0.0
    %108 = vmatprep.subr.mxu0 0.0
    %109 = vmatpush1.msra.mxu0 0.0
    %110 = vmatprep.subr.mxu0 0.0
    %111 = vmatpush1.msra.mxu0 0.0
    %112 = vmatprep.subr.mxu0 0.0
    %113 = vmatpush1.msra.mxu0 0.0
    %114 = vmatprep.subr.mxu0 0.0
    %115 = vmatpush1.msra.mxu0 0.0
    %116 = vmatprep.subr.mxu0 0.0
    %117 = vmatpush1.msra.mxu0 0.0
    %118 = vmatprep.subr.mxu0 0.0
    %119 = vmatpush1.msra.mxu0 0.0
    %120 = vmatprep.subr.mxu0 0.0
    %121 = vmatpush1.msra.mxu0 0.0
    %122 = vmatprep.subr.mxu0 0.0
    %123 = vmatpush1.msra.mxu0 0.0
    %124 = vmatprep.subr.mxu0 0.0
    %125 = vmatpush1.msra.mxu0 0.0
    %126 = vmatprep.subr.mxu0 0.0
    %127 = vmatpush1.msra.mxu0 0.0
    %128 = vmatprep.subr.mxu0 0.0
    %129 = vmatpush1.msra.mxu0 0.0
    %130 = vmatprep.subr.mxu0 0.0
    %131 = vmatpush1.msra.mxu0 %v101
    %132 = vmatprep.subr.mxu0 0.0
    %133 = vmatpush1.msra.mxu0 %v100
    %134 = vmatprep.subr.mxu0 0.0
    %135 = vmatpush1.msra.mxu0 %v99
    %136 = vmatprep.subr.mxu0 0.0
    %137 = vmatpush1.msra.mxu0 %v98
    %138 = vmatprep.subr.mxu0 0.0
    %139 = vmatpush2.msra.mxu0 0.0
    %140 = vmatprep.subr.mxu0 0.0
    %141 = vmatpush2.msra.mxu0 0.0
    %142 = vmatprep.subr.mxu0 0.0
    %143 = vmatpush2.msra.mxu0 0.0
    %144 = vmatprep.subr.mxu0 0.0
    %145 = vmatpush2.msra.mxu0 0.0
    %146 = vmatprep.subr.mxu0 0.0
    %147 = vmatpush2.msra.mxu0 0.0
    %148 = vmatprep.subr.mxu0 0.0
    %149 = vmatpush2.msra.mxu0 0.0
    %150 = vmatprep.subr.mxu0 0.0
    %151 = vmatpush2.msra.mxu0 0.0
    %152 = vmatprep.subr.mxu0 0.0
    %153 = vmatpush2.msra.mxu0 0.0
    %154 = vmatprep.subr.mxu0 0.0
    %155 = vmatpush2.msra.mxu0 0.0
    %156 = vmatprep.subr.mxu0 0.0
    %157 = vmatpush2.msra.mxu0 0.0
    %158 = vmatprep.subr.mxu0 0.0
    %159 = vmatpush2.msra.mxu0 0.0
    %160 = vmatprep.subr.mxu0 0.0
    %161 = vmatpush2.msra.mxu0 0.0
    %162 = vmatprep.subr.mxu0 0.0
    %163 = vmatpush2.msra.mxu0 0.0
    %164 = vmatprep.subr.mxu0 0.0
    %165 = vmatpush2.msra.mxu0 0.0
    %166 = vmatprep.subr.mxu0 0.0
    %167 = vmatpush2.msra.mxu0 0.0
    %168 = vmatprep.subr.mxu0 0.0
    %169 = vmatpush2.msra.mxu0 0.0
    %170 = vmatprep.mubr.f32.mxu0 0.0
    %171 = vmatmul.mubr.f32.gmra.mxu0 %v104
    %v172 = vpop.f32.mrf.mxu0
    %v173 = vadd.f32 0.0, %v172
    %v174 = vpop.f32.mrf.mxu0
    %175 = vdwg.mxu0
    %vm176 = vcmask 31744
    %177 = vst.msk [vmem:[%s5] sm:$0xff] %vm176, %v173
    %v178 = vld [vmem:[%s3] sm:$0xff]
    %v179 = vld [vmem:[%s3 + $0x8] sm:$0xff]
    %v180 = vld [vmem:[%s3 + $0x10] sm:$0xff]
    %v181 = vld [vmem:[%s3 + $0x18] sm:$0xff]
    %182 = vmatprep.subr.mxu0 0.0
    %183 = vmatpush1.msra.mxu0 0.0
    %184 = vmatprep.subr.mxu0 0.0
    %185 = vmatpush1.msra.mxu0 0.0
    %186 = vmatprep.subr.mxu0 0.0
    %187 = vmatpush1.msra.mxu0 0.0
    %188 = vmatprep.subr.mxu0 0.0
    %189 = vmatpush1.msra.mxu0 0.0
    %190 = vmatprep.subr.mxu0 0.0
    %191 = vmatpush1.msra.mxu0 0.0
    %192 = vmatprep.subr.mxu0 0.0
    %193 = vmatpush1.msra.mxu0 0.0
    %194 = vmatprep.subr.mxu0 0.0
    %195 = vmatpush1.msra.mxu0 0.0
    %196 = vmatprep.subr.mxu0 0.0
    %197 = vmatpush1.msra.mxu0 0.0
    %198 = vmatprep.subr.mxu0 0.0
    %199 = vmatpush1.msra.mxu0 0.0
    %200 = vmatprep.subr.mxu0 0.0
    %201 = vmatpush1.msra.mxu0 0.0
    %202 = vmatprep.subr.mxu0 0.0
    %203 = vmatpush1.msra.mxu0 0.0
    %204 = vmatprep.subr.mxu0 0.0
    %205 = vmatpush1.msra.mxu0 0.0
    %206 = vmatprep.subr.mxu0 0.0
    %207 = vmatpush1.msra.mxu0 %v181
    %208 = vmatprep.subr.mxu0 0.0
    %209 = vmatpush1.msra.mxu0 %v180
    %210 = vmatprep.subr.mxu0 0.0
    %211 = vmatpush1.msra.mxu0 %v179
    %212 = vmatprep.subr.mxu0 0.0
    %213 = vmatpush1.msra.mxu0 %v178
    %214 = vmatprep.subr.mxu0 0.0
    %215 = vmatpush2.msra.mxu0 0.0
    %216 = vmatprep.subr.mxu0 0.0
    %217 = vmatpush2.msra.mxu0 0.0
    %218 = vmatprep.subr.mxu0 0.0
    %219 = vmatpush2.msra.mxu0 0.0
    %220 = vmatprep.subr.mxu0 0.0
    %221 = vmatpush2.msra.mxu0 0.0
    %222 = vmatprep.subr.mxu0 0.0
    %223 = vmatpush2.msra.mxu0 0.0
    %224 = vmatprep.subr.mxu0 0.0
    %225 = vmatpush2.msra.mxu0 0.0
    %226 = vmatprep.subr.mxu0 0.0
    %227 = vmatpush2.msra.mxu0 0.0
    %228 = vmatprep.subr.mxu0 0.0
    %229 = vmatpush2.msra.mxu0 0.0
    %230 = vmatprep.subr.mxu0 0.0
    %231 = vmatpush2.msra.mxu0 0.0
    %232 = vmatprep.subr.mxu0 0.0
    %233 = vmatpush2.msra.mxu0 0.0
    %234 = vmatprep.subr.mxu0 0.0
    %235 = vmatpush2.msra.mxu0 0.0
    %236 = vmatprep.subr.mxu0 0.0
    %237 = vmatpush2.msra.mxu0 0.0
    %238 = vmatprep.subr.mxu0 0.0
    %239 = vmatpush2.msra.mxu0 0.0
    %240 = vmatprep.subr.mxu0 0.0
    %241 = vmatpush2.msra.mxu0 0.0
    %242 = vmatprep.subr.mxu0 0.0
    %243 = vmatpush2.msra.mxu0 0.0
    %244 = vmatprep.subr.mxu0 0.0
    %245 = vmatpush2.msra.mxu0 0.0
    %246 = vmatprep.mubr.f32.mxu0 0.0
    %247 = vmatmul.mubr.f32.gmra.mxu0 %v104
    %v248 = vpop.f32.mrf.mxu0
    %v249 = vadd.f32 0.0, %v248
    %v250 = vpop.f32.mrf.mxu0
    %251 = vdwg.mxu0
    %252 = vst.msk [vmem:[%s6] sm:$0xff] %vm176, %v249
    %v253 = vpack.c.bf16 %v95, %v95
    %vm254 = vcmask 257024
    %255 = vst.msk [vmem:[#allocation2] sm:$0xf] %vm254, %v253
    // Predicated region
    $region18: #{tpu_custom_call.1} parent=1 // pred_check
      _
    $region19: #{tpu_custom_call.1} parent=1 // pred_check_branch
      %257 = sbr.rel (0) target = $region21
    $region20: #{tpu_custom_call.1} parent=1 // pred_region
      %s259 = ssub.s32 64, 64
      %260 = vsyncadd [#allocation3], %s259
      %s262 = sshll.u32 [#allocation2], 4
      %s263 = int_to_ptr.vmem [resolvable:$true] %s262
      %265 = dma.vmem_to_hbm [thread:$0]  %s263, 64, %s4, [#allocation3]
    $region21: #{tpu_custom_call.1} parent=1 // pred_fallthru
      _
    // Predicated region
    $region22: #{tpu_custom_call.1} parent=1 // pred_check
      _
    $region23: #{tpu_custom_call.1} parent=1 // pred_check_branch
      %267 = sbr.rel (0) target = $region25
    $region24: #{tpu_custom_call.1} parent=1 // pred_region
      _
    $region25: #{tpu_custom_call.1} parent=1 // pred_fallthru
      _
    // Predicated region
    $region26: #{tpu_custom_call.1} parent=1 // pred_check
      _
    $region27: #{tpu_custom_call.1} parent=1 // pred_check_branch
      %269 = sbr.rel (0) target = $region29
    $region28: #{tpu_custom_call.1} parent=1 // pred_region
      _
    $region29: #{tpu_custom_call.1} parent=1 // pred_fallthru
      _
    // Predicated region
    $region30: #{tpu_custom_call.1} parent=1 // pred_check
      _
    $region31: #{tpu_custom_call.1} parent=1 // pred_check_branch
      %271 = sbr.rel (0) target = $region33
    $region32: #{tpu_custom_call.1} parent=1 // pred_region
      %272 = dma.done [#allocation3], 64
    $region33: #{tpu_custom_call.1} parent=1 // pred_fallthru
      _
    // Predicated region
    $region34: #{tpu_custom_call.1} parent=1 // pred_check
      _
    $region35: #{tpu_custom_call.1} parent=1 // pred_check_branch
      %274 = sbr.rel (0) target = $region37
    $region36: #{tpu_custom_call.1} parent=1 // pred_region
      _
    $region37: #{tpu_custom_call.1} parent=1 // pred_fallthru
      _
    // Predicated region
    $region38: #{tpu_custom_call.1} parent=1 // pred_check
      _
    $region39: #{tpu_custom_call.1} parent=1 // pred_check_branch
      %276 = sbr.rel (0) target = $region41
    $region40: #{tpu_custom_call.1} parent=1 // pred_region
      _
    $region41: #{tpu_custom_call.1} parent=1 // pred_fallthru
      _
    %277 = vsyncpa [#allocation3], 1

</llo_original>
